<compile_context>
chip_gen: v5e
topology: v5e:2x2
jax: 0.10.0
libtpu: 0.0.40
codegen_flags: <defaults>
</compile_context>

<pallas_src>
import math

import jax
import jax.numpy as jnp
from jax.experimental import pallas as pl
from jax.experimental.pallas import tpu as pltpu


# ----------------------------------------------------------------------------
# Parameter-setup helpers (plain JAX glue, mirror the PyTorch functions)
# ----------------------------------------------------------------------------
def cartesian_to_hyperspherical(x):
    """x: [n_in, n_out] -> (angles [n_in-1, n_out], radius [1, n_out])."""
    numerator = x[:-1, :]
    correction = jnp.sqrt(jnp.sum(x[-2:, :] ** 2, axis=0, keepdims=True))
    numerator = numerator.at[-1, :].add(correction[0])
    denominator = jnp.flip(
        jnp.sqrt(jnp.cumsum(jnp.flip(x[1:, :] ** 2, axis=0), axis=0)), axis=0
    )
    angles = math.pi / 2.0 - jnp.arctan2(numerator, denominator)
    angles = angles.at[-1, :].multiply(2.0)
    radius = jnp.sqrt(jnp.sum(x ** 2, axis=0, keepdims=True))
    return angles, radius


def hyperspherical_to_cartesian(angles, radius):
    """angles: [n_in-1, n_out], radius scalar or [1, n_out] -> cartesian [n_in, n_out]."""
    pad = jnp.zeros((1, angles.shape[-1]), dtype=angles.dtype)
    aug = jnp.concatenate([pad, angles], axis=-2)
    cos_a = jnp.cos(aug)
    rearranged_cos = jnp.roll(cos_a, -1, axis=-2)
    sin_a = jnp.sin(aug)
    sin_a = sin_a.at[0].set(jnp.ones((angles.shape[-1],), dtype=angles.dtype))
    acc_sin = jnp.cumprod(sin_a, axis=-2)
    return radius * acc_sin * rearranged_cos


def _round_up(x, m):
    return ((x + m - 1) // m) * m


# ----------------------------------------------------------------------------
# Pallas kernel: out = x @ W + bias   (W has radius folded in, bias = Lambda*radius)
# ----------------------------------------------------------------------------
def geolinear_kernel(x_ref, w_ref, b_ref, o_ref, acc_ref):
    k = pl.program_id(2)

    @pl.when(k == 0)
    def _():
        acc_ref[...] = jnp.zeros_like(acc_ref)

    acc_ref[...] += jnp.dot(
        x_ref[...], w_ref[...], preferred_element_type=jnp.float32
    )

    @pl.when(k == pl.num_programs(2) - 1)
    def _():
        o_ref[...] = (acc_ref[...] + b_ref[...]).astype(o_ref.dtype)


@jax.jit
def geo_linear(x, angles, Lambda, radius):
    """GeoLinear forward. x: [B, in_features] -> [B, out_features]."""
    orig_dtype = x.dtype
    B, Fin = x.shape
    Fout = angles.shape[1]

    # --- parameter glue (plain JAX, fused by XLA) ------------------------------
    rad_row = radius.reshape(1, Fout).astype(jnp.float32)
    # Fold radius directly into the cartesian weight columns.
    w = hyperspherical_to_cartesian(angles.astype(jnp.float32), rad_row)
    lam = Lambda if Lambda is not None else jnp.zeros((Fout,), jnp.float32)
    bias = (lam.astype(jnp.float32) * radius.astype(jnp.float32)).reshape(1, Fout)

    # bf16 operands into the MXU; accumulation stays f32 in the kernel.
    x_lo = x.astype(jnp.bfloat16)
    w_lo = w.astype(jnp.bfloat16)

    # --- tile sizes: lane/sublane aligned, sized to fit every generation's VMEM ---
    tm = min(256, _round_up(B, 8))       # sublane-aligned M tile
    tn = min(512, _round_up(Fout, 128))  # lane-dense N tile (>=128 -> unmasked vst)
    tk = min(512, _round_up(Fin, 128))   # lane-aligned K tile

    Bp = _round_up(B, tm)
    Np = _round_up(Fout, tn)
    Kp = _round_up(Fin, tk)

    x_p = jnp.pad(x_lo, ((0, Bp - B), (0, Kp - Fin)))
    w_p = jnp.pad(w_lo, ((0, Kp - Fin), (0, Np - Fout)))
    b_p = jnp.pad(bias, ((0, 0), (0, Np - Fout)))

    grid = (Bp // tm, Np // tn, Kp // tk)

    out = pl.pallas_call(
        geolinear_kernel,
        out_shape=jax.ShapeDtypeStruct((Bp, Np), orig_dtype),
        grid_spec=pltpu.PrefetchScalarGridSpec(
            num_scalar_prefetch=0,
            grid=grid,
            in_specs=[
                pl.BlockSpec((tm, tk), lambda i, j, k: (i, k)),   # x tile
                pl.BlockSpec((tk, tn), lambda i, j, k: (k, j)),   # W tile (streamed over K)
                pl.BlockSpec((1, tn), lambda i, j, k: (0, j)),    # bias tile (depends on j only)
            ],
            out_specs=pl.BlockSpec((tm, tn), lambda i, j, k: (i, j)),
            scratch_shapes=[pltpu.VMEM((tm, tn), jnp.float32)],   # f32 accumulator
        ),
        compiler_params=pltpu.CompilerParams(
            dimension_semantics=("parallel", "parallel", "arbitrary"),
            vmem_limit_bytes=32 * 1024 * 1024,
        ),
    )(x_p, w_p, b_p)

    return out[:B, :Fout]


# ----------------------------------------------------------------------------
# Driver
# ----------------------------------------------------------------------------
if __name__ == "__main__":
    in_features = 96
    out_features = 160
    batch = 20

    key = jax.random.PRNGKey(0)
    k_w, k_x = jax.random.split(key)

    # Deterministic parameter init, mirroring GeoLinear.reset_parameters():
    #   uniform(-t, t) cartesian weight -> hyperspherical angles/radius, Lambda = 0.
    threshold = math.sqrt(6.0 / (in_features + out_features))
    weight_init = (
        jax.random.uniform(k_w, (in_features, out_features), dtype=jnp.float32)
        * 2.0 * threshold - threshold
    )
    angles, radius2d = cartesian_to_hyperspherical(weight_init)
    radius = radius2d[0]                              # [out_features]
    Lambda = jnp.zeros((out_features,), jnp.float32)

    x = jax.random.normal(k_x, (batch, in_features), dtype=jnp.float32)

    out = geo_linear(x, angles, Lambda, radius)
    out = jax.block_until_ready(out)

    # Reference computed with the same bf16-cast operands (kernel accumulates in f32).
    w_scaled = hyperspherical_to_cartesian(angles, radius.reshape(1, -1))
    w_bf = w_scaled.astype(jnp.bfloat16).astype(jnp.float32)
    x_bf = x.astype(jnp.bfloat16).astype(jnp.float32)
    out_ref = x_bf @ w_bf + (Lambda * radius)[None, :]

    assert out.shape == (batch, out_features)
    assert jnp.allclose(out, out_ref, atol=1e-3, rtol=1e-3), "mismatch vs reference"

    print("KERNEL_OK")
</pallas_src>

<mosaic_0001>
module attributes {stable_mosaic.version = 11 : i64} {
  func.func @geolinear_kernel(%arg0: i32, %arg1: i32, %arg2: i32, %arg3: memref<24x128xbf16, #tpu.memory_space<vmem>>, %arg4: memref<128x256xbf16, #tpu.memory_space<vmem>>, %arg5: memref<1x256xf32, #tpu.memory_space<vmem>>, %arg6: memref<24x256xf32, #tpu.memory_space<vmem>>, %arg7: memref<24x256xf32, #tpu.memory_space<vmem>>) attributes {dimension_semantics = [#tpu.dimension_semantics<parallel>, #tpu.dimension_semantics<parallel>, #tpu.dimension_semantics<arbitrary>], iteration_bounds = array<i64: 1, 1, 1>, scalar_prefetch = 0 : i64, scratch_operands = 1 : i64, tpu.core_type = #tpu.core_type<tc>, window_params = [{transform_indices = @transform_0, window_bounds = array<i64: 24, 128>}, {transform_indices = @transform_1, window_bounds = array<i64: 128, 256>}, {transform_indices = @transform_2, window_bounds = array<i64: 1, 256>}, {transform_indices = @transform_3, window_bounds = array<i64: 24, 256>}]} {
    %c0_i32 = arith.constant 0 : i32
    %0 = arith.cmpi eq, %arg2, %c0_i32 : i32
    %1 = arith.extui %0 : i1 to i32
    %c0_i32_0 = arith.constant 0 : i32
    %2 = arith.cmpi ne, %1, %c0_i32_0 : i32
    scf.if %2 {
      %cst_10 = arith.constant 0.000000e+00 : f32
      %12 = vector.broadcast %cst_10 : f32 to vector<24x256xf32>
      %c0_11 = arith.constant 0 : index
      %c0_12 = arith.constant 0 : index
      %13 = vector.load %arg7[%c0_11, %c0_12] : memref<24x256xf32, #tpu.memory_space<vmem>>, vector<24x256xf32>
      tpu.vector_store %arg7[%c0_11, %c0_12], %12 {strides = array<i32>} : memref<24x256xf32, #tpu.memory_space<vmem>>, vector<24x256xf32>,
    } else {
    }
    %c0 = arith.constant 0 : index
    %c0_1 = arith.constant 0 : index
    %3 = vector.load %arg7[%c0, %c0_1] : memref<24x256xf32, #tpu.memory_space<vmem>>, vector<24x256xf32>
    %c0_2 = arith.constant 0 : index
    %c0_3 = arith.constant 0 : index
    %4 = vector.load %arg3[%c0_2, %c0_3] : memref<24x128xbf16, #tpu.memory_space<vmem>>, vector<24x128xbf16>
    %c0_4 = arith.constant 0 : index
    %c0_5 = arith.constant 0 : index
    %5 = vector.load %arg4[%c0_4, %c0_5] : memref<128x256xbf16, #tpu.memory_space<vmem>>, vector<128x256xbf16>
    %cst = arith.constant dense<0.000000e+00> : vector<24x256xf32>
    %6 = tpu.matmul %4, %5, %cst {dimension_numbers = #tpu.dot_dimension_numbers<[1], [0], [0], [1], [0, 0, 1, 1], [], []>} : vector<24x128xbf16>, vector<128x256xbf16>, vector<24x256xf32> -> vector<24x256xf32>
    %7 = arith.addf %3, %6 : vector<24x256xf32>
    %c0_6 = arith.constant 0 : index
    %c0_7 = arith.constant 0 : index
    %8 = vector.load %arg7[%c0_6, %c0_7] : memref<24x256xf32, #tpu.memory_space<vmem>>, vector<24x256xf32>
    tpu.vector_store %arg7[%c0_6, %c0_7], %7 {strides = array<i32>} : memref<24x256xf32, #tpu.memory_space<vmem>>, vector<24x256xf32>,
    %c0_i32_8 = arith.constant 0 : i32
    %9 = arith.cmpi eq, %arg2, %c0_i32_8 : i32
    %10 = arith.extui %9 : i1 to i32
    %c0_i32_9 = arith.constant 0 : i32
    %11 = arith.cmpi ne, %10, %c0_i32_9 : i32
    scf.if %11 {
      %c0_10 = arith.constant 0 : index
      %c0_11 = arith.constant 0 : index
      %12 = vector.load %arg7[%c0_10, %c0_11] : memref<24x256xf32, #tpu.memory_space<vmem>>, vector<24x256xf32>
      %c0_12 = arith.constant 0 : index
      %c0_13 = arith.constant 0 : index
      %13 = vector.load %arg5[%c0_12, %c0_13] : memref<1x256xf32, #tpu.memory_space<vmem>>, vector<1x256xf32>
      %14 = vector.broadcast %13 : vector<1x256xf32> to vector<24x256xf32>
      %15 = arith.addf %12, %14 : vector<24x256xf32>
      %c0_14 = arith.constant 0 : index
      %c0_15 = arith.constant 0 : index
      %16 = vector.load %arg6[%c0_14, %c0_15] : memref<24x256xf32, #tpu.memory_space<vmem>>, vector<24x256xf32>
      tpu.vector_store %arg6[%c0_14, %c0_15], %15 {strides = array<i32>} : memref<24x256xf32, #tpu.memory_space<vmem>>, vector<24x256xf32>,
    } else {
    }
    return
  }
  func.func @transform_0(%arg0: i32, %arg1: i32, %arg2: i32) -> (i32, i32) {
    %c0_i32 = arith.constant 0 : i32
    return %arg0, %arg2 : i32, i32
  }
  func.func @transform_1(%arg0: i32, %arg1: i32, %arg2: i32) -> (i32, i32) {
    %c0_i32 = arith.constant 0 : i32
    return %arg2, %arg1 : i32, i32
  }
  func.func @transform_2(%arg0: i32, %arg1: i32, %arg2: i32) -> (i32, i32) {
    %c0_i32 = arith.constant 0 : i32
    %c0_i32_0 = arith.constant 0 : i32
    return %c0_i32, %arg1 : i32, i32
  }
  func.func @transform_3(%arg0: i32, %arg1: i32, %arg2: i32) -> (i32, i32) {
    %c0_i32 = arith.constant 0 : i32
    return %arg0, %arg1 : i32, i32
  }
}

</mosaic_0001>

<llo_original>
// kernel: mul.13
$region0: #{mul.13}
  #allocation0 [shape = 's32[1]{0}', space=sflag, size = 0x4, scoped, tag = 'scoped memory for mul.13']
  %s0 = inlined_call_operand.vmem [shape: f32[160], index: 0, kind: input, shape index: {}]
  %s1 = inlined_call_operand.vmem [shape: f32[160], index: 1, kind: input, shape index: {}]
  %s2 = inlined_call_operand.vmem [shape: f32[160], index: 2, kind: output, shape index: {}]
  %v3 = vld [vmem:[%s0] sm:$0x3]
  %v4 = vld [vmem:[%s1] sm:$0x3]
  %5 = xla_tuple %v3, %v4
  %6 = xla_tuple %5
  %v7 = vmul.f32 %v3, %v4
  %8 = xla_tuple %v7
  %9 = vst [vmem:[%s2] sm:$0x3] %v7

// kernel: geo_linear.1
$region0: #{geo_linear.1}
  #allocation0 [shape = 'u32[]', space=smem, size = 0x4, offset = 0x4, fixed_abs, tag = 'smem constant byte address 0x4 - core index']
  #allocation1 [shape = 'u32[72,128]{1,0:T(1,128)}', space=vmem, size = 0x9000, scoped, tag = 'internal scratch']
  #allocation2 [shape = 'f32[24,256]{1,0:T(8,128)}', space=vmem, size = 0x6000, scoped, tag = 'scratch operand']
  %s0 = inlined_call_operand.vmem [shape: bf16[24,128], index: 0, kind: input, shape index: {}]
  %s1 = inlined_call_operand.vmem [shape: bf16[128,256], index: 1, kind: input, shape index: {}]
  %s2 = inlined_call_operand.vmem [shape: f32[1,256], index: 2, kind: input, shape index: {}]
  %s3 = inlined_call_operand.hbm [shape: f32[24,256], index: 3, kind: output, shape index: {}]
  %s4 = sld [smem:[#allocation0]]
  $region30: #{geo_linear.1} parent=0
    _
  %s6 = ssub.s32 1, %s4
  %s7 = scalar_select 0, %s6, %s4
  $region1: #{geo_linear.1} parent=0
    #allocation3 [shape = 'u8[24576]{0}', space=vmem, size = 0x6000, scoped, tag = 'output window, operand 0, single buffered']
    #allocation4 [shape = 's32[1]{0}', space=sflag, size = 0x4, scoped, tag = 'scoped memory for geo_linear.1']
    %8 = vsyncpa [#allocation4], 0
    // Predicated region
    $region2: #{geo_linear.1} parent=1 // pred_check
      _
    $region3: #{geo_linear.1} parent=1 // pred_check_branch
      %10 = sbr.rel (0) target = $region5
    $region4: #{geo_linear.1} parent=1 // pred_region
      _
    $region5: #{geo_linear.1} parent=1 // pred_fallthru
      _
    // Predicated region
    $region6: #{geo_linear.1} parent=1 // pred_check
      _
    $region7: #{geo_linear.1} parent=1 // pred_check_branch
      %12 = sbr.rel (0) target = $region9
    $region8: #{geo_linear.1} parent=1 // pred_region
      _
    $region9: #{geo_linear.1} parent=1 // pred_fallthru
      _
    // Predicated region
    $region10: #{geo_linear.1} parent=1 // pred_check
      _
    $region11: #{geo_linear.1} parent=1 // pred_check_branch
      %14 = sbr.rel (0) target = $region13
    $region12: #{geo_linear.1} parent=1 // pred_region
      _
    $region13: #{geo_linear.1} parent=1 // pred_fallthru
      _
    %p15 = scmp.eq.s32.totalorder 0, 0
    // Predicated region
    $region14: #{geo_linear.1} parent=1 // pred_check
      %p16 = pneg %p15
    $region15: #{geo_linear.1} parent=1 // pred_check_branch
      %18 = sbr.rel (%p16) target = $region17
    $region16: #{geo_linear.1} parent=1 // pred_region
      %19 = vst [vmem:[#allocation2] sm:$0xff] 0.0
      %20 = vst [vmem:[#allocation2 + $0x8] sm:$0xff] 0.0
      %21 = vst [vmem:[#allocation2 + $0x10] sm:$0xff] 0.0
      %22 = vst [vmem:[#allocation2 + $0x18] sm:$0xff] 0.0
      %23 = vst [vmem:[#allocation2 + $0x20] sm:$0xff] 0.0
      %24 = vst [vmem:[#allocation2 + $0x28] sm:$0xff] 0.0
    $region17: #{geo_linear.1} parent=1 // pred_fallthru
      _
    %v25 = vld [vmem:[#allocation2] sm:$0xff]
    %v26 = vld [vmem:[#allocation2 + $0x8] sm:$0xff]
    %v27 = vld [vmem:[#allocation2 + $0x10] sm:$0xff]
    %v28 = vld [vmem:[#allocation2 + $0x18] sm:$0xff]
    %v29 = vld [vmem:[#allocation2 + $0x20] sm:$0xff]
    %v30 = vld [vmem:[#allocation2 + $0x28] sm:$0xff]
    %v31 = vld [vmem:[%s0] sm:$0xf]
    %v32 = vld [vmem:[%s0 + $0x4] sm:$0xf]
    %v33 = vld [vmem:[%s0 + $0x8] sm:$0xf]
    %v34 = vld [vmem:[%s1] sm:$0xff]
    %v35 = vld [vmem:[%s1 + $0x8] sm:$0xff]
    %v36 = vld [vmem:[%s1 + $0x10] sm:$0xff]
    %v37 = vld [vmem:[%s1 + $0x18] sm:$0xff]
    %v38 = vld [vmem:[%s1 + $0x20] sm:$0xff]
    %v39 = vld [vmem:[%s1 + $0x28] sm:$0xff]
    %v40 = vld [vmem:[%s1 + $0x30] sm:$0xff]
    %v41 = vld [vmem:[%s1 + $0x38] sm:$0xff]
    %v42 = vld [vmem:[%s1 + $0x40] sm:$0xff]
    %v43 = vld [vmem:[%s1 + $0x48] sm:$0xff]
    %v44 = vld [vmem:[%s1 + $0x50] sm:$0xff]
    %v45 = vld [vmem:[%s1 + $0x58] sm:$0xff]
    %v46 = vld [vmem:[%s1 + $0x60] sm:$0xff]
    %v47 = vld [vmem:[%s1 + $0x68] sm:$0xff]
    %v48 = vld [vmem:[%s1 + $0x70] sm:$0xff]
    %v49 = vld [vmem:[%s1 + $0x78] sm:$0xff]
    %v53 = vunpack.c.l.b16 %v31
    %v54 = vunpack.c.l.b16 %v32
    %v55 = vunpack.c.l.b16 %v33
    %v56 = vpack.c.b16 %v54, %v53
    %v57 = vpack.c.b16 %v55, %v55
    %v76 = vunpack.c.l.b16 %v34
    %v77 = vunpack.c.h.b16 %v34
    %v78 = vunpack.c.l.b16 %v35
    %v79 = vunpack.c.h.b16 %v35
    %v80 = vunpack.c.l.b16 %v36
    %v81 = vunpack.c.h.b16 %v36
    %v82 = vunpack.c.l.b16 %v37
    %v83 = vunpack.c.h.b16 %v37
    %v84 = vunpack.c.l.b16 %v38
    %v85 = vunpack.c.h.b16 %v38
    %v86 = vunpack.c.l.b16 %v39
    %v87 = vunpack.c.h.b16 %v39
    %v88 = vunpack.c.l.b16 %v40
    %v89 = vunpack.c.h.b16 %v40
    %v90 = vunpack.c.l.b16 %v41
    %v91 = vunpack.c.h.b16 %v41
    %v92 = vunpack.c.l.b16 %v42
    %v93 = vunpack.c.h.b16 %v42
    %v94 = vunpack.c.l.b16 %v43
    %v95 = vunpack.c.h.b16 %v43
    %v96 = vunpack.c.l.b16 %v44
    %v97 = vunpack.c.h.b16 %v44
    %v98 = vunpack.c.l.b16 %v45
    %v99 = vunpack.c.h.b16 %v45
    %v100 = vunpack.c.l.b16 %v46
    %v101 = vunpack.c.h.b16 %v46
    %v102 = vunpack.c.l.b16 %v47
    %v103 = vunpack.c.h.b16 %v47
    %v104 = vunpack.c.l.b16 %v48
    %v105 = vunpack.c.h.b16 %v48
    %v106 = vunpack.c.l.b16 %v49
    %v107 = vunpack.c.h.b16 %v49
    %v108 = vpack.c.b16 %v78, %v76
    %v109 = vpack.c.b16 %v79, %v77
    %v110 = vpack.c.b16 %v82, %v80
    %v111 = vpack.c.b16 %v83, %v81
    %v112 = vpack.c.b16 %v86, %v84
    %v113 = vpack.c.b16 %v87, %v85
    %v114 = vpack.c.b16 %v90, %v88
    %v115 = vpack.c.b16 %v91, %v89
    %v116 = vpack.c.b16 %v94, %v92
    %v117 = vpack.c.b16 %v95, %v93
    %v118 = vpack.c.b16 %v98, %v96
    %v119 = vpack.c.b16 %v99, %v97
    %v120 = vpack.c.b16 %v102, %v100
    %v121 = vpack.c.b16 %v103, %v101
    %v122 = vpack.c.b16 %v106, %v104
    %v123 = vpack.c.b16 %v107, %v105
    %140 = vmatpush.bf16.msra.mxu0 %v122
    %141 = vmatpush.bf16.msra.mxu0 %v120
    %142 = vmatpush.bf16.msra.mxu0 %v118
    %143 = vmatpush.bf16.msra.mxu0 %v116
    %144 = vmatpush.bf16.msra.mxu0 %v114
    %145 = vmatpush.bf16.msra.mxu0 %v112
    %146 = vmatpush.bf16.msra.mxu0 %v110
    %147 = vmatpush.bf16.msra.mxu0 %v108
    %148 = vmatmul.bf16.gmra.mxu0 %v56
    %v149 = vpop.f32.mrf.mxu0
    %v150 = vadd.f32 0.0, %v149
    %v151 = vpop.f32.mrf.mxu0
    %v152 = vadd.f32 0.0, %v151
    %153 = vmatmul.bf16.gmra.mxu0 %v57
    %v154 = vpop.f32.mrf.mxu0
    %v155 = vadd.f32 0.0, %v154
    %v156 = vpop.f32.mrf.mxu0
    %157 = vdwg.mxu0
    %158 = vmatpush.bf16.msra.mxu0 %v123
    %159 = vmatpush.bf16.msra.mxu0 %v121
    %160 = vmatpush.bf16.msra.mxu0 %v119
    %161 = vmatpush.bf16.msra.mxu0 %v117
    %162 = vmatpush.bf16.msra.mxu0 %v115
    %163 = vmatpush.bf16.msra.mxu0 %v113
    %164 = vmatpush.bf16.msra.mxu0 %v111
    %165 = vmatpush.bf16.msra.mxu0 %v109
    %166 = vmatmul.bf16.gmra.mxu0 %v56
    %v167 = vpop.f32.mrf.mxu0
    %v168 = vadd.f32 0.0, %v167
    %v169 = vpop.f32.mrf.mxu0
    %v170 = vadd.f32 0.0, %v169
    %171 = vmatmul.bf16.gmra.mxu0 %v57
    %v172 = vpop.f32.mrf.mxu0
    %v173 = vadd.f32 0.0, %v172
    %v174 = vpop.f32.mrf.mxu0
    %175 = vdwg.mxu0
    %v176 = vadd.f32 %v25, %v150
    %v177 = vadd.f32 %v26, %v168
    %v178 = vadd.f32 %v27, %v152
    %v179 = vadd.f32 %v28, %v170
    %v180 = vadd.f32 %v29, %v155
    %v181 = vadd.f32 %v30, %v173
    %182 = vst [vmem:[#allocation2] sm:$0xff] %v176
    %183 = vst [vmem:[#allocation2 + $0x8] sm:$0xff] %v177
    %184 = vst [vmem:[#allocation2 + $0x10] sm:$0xff] %v178
    %185 = vst [vmem:[#allocation2 + $0x18] sm:$0xff] %v179
    %186 = vst [vmem:[#allocation2 + $0x20] sm:$0xff] %v180
    %187 = vst [vmem:[#allocation2 + $0x28] sm:$0xff] %v181
    // Predicated region
    $region18: #{geo_linear.1} parent=1 // pred_check
      %p188 = pneg %p15
    $region19: #{geo_linear.1} parent=1 // pred_check_branch
      %190 = sbr.rel (%p188) target = $region21
    $region20: #{geo_linear.1} parent=1 // pred_region
      %v191 = vld [vmem:[#allocation2] sm:$0xff]
      %v192 = vld [vmem:[#allocation2 + $0x8] sm:$0xff]
      %v193 = vld [vmem:[#allocation2 + $0x10] sm:$0xff]
      %v194 = vld [vmem:[#allocation2 + $0x18] sm:$0xff]
      %v195 = vld [vmem:[#allocation2 + $0x20] sm:$0xff]
      %v196 = vld [vmem:[#allocation2 + $0x28] sm:$0xff]
      %v197 = vld [vmem:[%s2] sm:$0x3]
      %v199 = vperm.slane %v197, 0
      %v200 = vperm.slane %v197, 1
      %v203 = vadd.f32 %v191, %v199
      %v204 = vadd.f32 %v192, %v200
      %v205 = vadd.f32 %v193, %v199
      %v206 = vadd.f32 %v194, %v200
      %v207 = vadd.f32 %v195, %v199
      %v208 = vadd.f32 %v196, %v200
      %209 = vst [vmem:[#allocation3] sm:$0xff] %v203
      %210 = vst [vmem:[#allocation3 + $0x8] sm:$0xff] %v204
      %211 = vst [vmem:[#allocation3 + $0x10] sm:$0xff] %v205
      %212 = vst [vmem:[#allocation3 + $0x18] sm:$0xff] %v206
      %213 = vst [vmem:[#allocation3 + $0x20] sm:$0xff] %v207
      %214 = vst [vmem:[#allocation3 + $0x28] sm:$0xff] %v208
    $region21: #{geo_linear.1} parent=1 // pred_fallthru
      _
    // Predicated region
    $region22: #{geo_linear.1} parent=1 // pred_check
      _
    $region23: #{geo_linear.1} parent=1 // pred_check_branch
      %216 = sbr.rel (0) target = $region25
    $region24: #{geo_linear.1} parent=1 // pred_region
      %218 = vsyncadd [#allocation4], 0
      %s219 = sshll.u32 [#allocation3], 4
      %s220 = int_to_ptr.vmem [resolvable:$true] %s219
      %s221 = sshll.u32 %s3, 4
      %s222 = int_to_ptr.hbm [resolvable:$true] %s221
      %227 = dma.vmem_to_hbm [thread:$0]  %s220, 768, %s222, [#allocation4], 256, 256, 16
    $region25: #{geo_linear.1} parent=1 // pred_fallthru
      _
    // Predicated region
    $region26: #{geo_linear.1} parent=1 // pred_check
      _
    $region27: #{geo_linear.1} parent=1 // pred_check_branch
      %229 = sbr.rel (0) target = $region29
    $region28: #{geo_linear.1} parent=1 // pred_region
      %231 = dma.done [#allocation4], 768
    $region29: #{geo_linear.1} parent=1 // pred_fallthru
      _
    %232 = vsyncpa [#allocation4], 1

</llo_original>
